<compile_context>
chip_gen: v5e
topology: v5e:2x2
jax: 0.10.0
libtpu: 0.0.40
codegen_flags: <defaults>
</compile_context>

<pallas_src>
import jax
import jax.numpy as jnp
from jax.experimental import pallas as pl
from jax.experimental.pallas import tpu as pltpu


# --------------------------------------------------------------------------- #
# Kernels
# --------------------------------------------------------------------------- #
def _group_pool_kernel_3d(x_ref, o_ref):
    # Dense path: x_ref (TM, rsNum, TL) -> o_ref (TM, TL); max over sublanes.
    o_ref[...] = jnp.max(x_ref[...], axis=1)


def _group_pool_kernel_acc(x_ref, o_ref):
    # Accumulator path: 2-D (TM, TL) blocks; grid axis 2 walks the rsNum
    # group members (output block is resident across that "arbitrary" axis).
    @pl.when(pl.program_id(2) == 0)
    def _init():
        o_ref[...] = x_ref[...]

    @pl.when(pl.program_id(2) != 0)
    def _update():
        o_ref[...] = jnp.maximum(o_ref[...], x_ref[...])


# --------------------------------------------------------------------------- #
# Tiling policy
# --------------------------------------------------------------------------- #
def _vmem_budget_bytes():
    """Generation-aware budget for the double-buffered (in + out) tiles."""
    cap = 64 * 1024 * 1024  # conservative default: v7x physical VMEM per TC
    try:
        cap = int(getattr(pltpu.get_tpu_info(), "vmem_capacity_bytes", cap))
    except Exception:
        pass
    # ~1/8 of physical VMEM, capped at 24 MiB (v7x guard-rail), floor 4 MiB.
    return max(4 * 1024 * 1024, min(cap // 8, 24 * 1024 * 1024))


def _choose_tiles(rows, hw, itemsize, rows_group, sublane_pack,
                  target_in_bytes=2 * 1024 * 1024):
    """Pick (TM, TL).

    TL: full HW when HW is not 128-aligned (contiguity forces it), otherwise a
        multiple of 128 that divides HW, capped at 4096 lanes.
    TM: sized so one INPUT tile is ~2 MiB, then capped so the parallel row
        axis keeps >= 8 grid steps (pipelining + v7x dual-TC sharding) without
        dropping below 8 sublanes per block, then clamped to the VMEM budget
        and rounded to the dtype sublane packing unit.
    """
    if hw % 128 == 0:
        n = hw // 128
        d = min(n, 32)                       # lane tile cap: 32 * 128 = 4096
        while n % d:
            d -= 1
        tl = d * 128
    else:
        # Full-extent lane block (may be < 128 lanes -> masked stores; the
        # real fix for tiny spatial maps is producer fusion, see TODO below).
        tl = hw

    in_per_row = rows_group * tl * itemsize      # input bytes per TM row / step
    out_per_row = tl * itemsize

    tm = max(1, target_in_bytes // in_per_row)
    # Keep >= 8 steps on the parallel row axis when the problem allows, but
    # never shrink blocks below 8 sublanes just to manufacture steps.
    min_tm = rows if rows < 8 else 8
    tm = min(tm, rows, max(min_tm, rows // 8))

    # Generation-aware guard: double-buffered in+out tiles must fit the budget.
    budget = _vmem_budget_bytes()
    tm = min(tm, max(1, budget // (2 * (in_per_row + out_per_row))))

    # Sublane-dense blocks: round to the dtype packing unit when possible.
    if tm >= sublane_pack:
        tm = (tm // sublane_pack) * sublane_pack
    elif tm >= 8:
        tm = (tm // 8) * 8
    return tm, tl


# --------------------------------------------------------------------------- #
# Wrapper
# --------------------------------------------------------------------------- #
def group_pooling(x, rot_num, scale_list):
    """x: (B, C*rsNum, H, W) NCHW -> (B, C, H, W), max over the rsNum group axis."""
    rs_num = rot_num * len(scale_list)
    B, CR, H, W = x.shape
    assert CR % rs_num == 0, "channel dim must be divisible by rotNum*len(scaleList)"
    C = CR // rs_num
    HW = H * W
    rows = B * C
    itemsize = jnp.dtype(x.dtype).itemsize
    sublane_pack = (8 * 4) // itemsize           # f32: 8, bf16: 16, int8/fp8: 32

    # Advisory cost estimate: mem-bound (reads everything, writes 1/rs_num).
    in_bytes = rows * rs_num * HW * itemsize
    out_bytes = rows * HW * itemsize
    cost = pl.CostEstimate(
        flops=rows * max(rs_num - 1, 0) * HW,    # comparisons; advisory only
        transcendentals=0,
        bytes_accessed=in_bytes + out_bytes,
    )

    # Dense 3-D path keeps rsNum on the sublane axis; only fully dense when
    # rsNum is a multiple of the dtype packing unit.  Otherwise use the
    # accumulator formulation (sublane-dense for any dtype / rsNum).
    use_acc = (rs_num > 1) and (rs_num % sublane_pack != 0) and (HW % 128 == 0)

    if use_acc:
        # (B*C, rsNum*HW) view; input block picks group member k via the
        # lane-block index (tl always divides HW on this path).
        xv = x.reshape(rows, rs_num * HW)
        tm, tl = _choose_tiles(rows, HW, itemsize, 1, sublane_pack)
        lane_blocks = HW // tl
        grid = (pl.cdiv(rows, tm), lane_blocks, rs_num)
        out = pl.pallas_call(
            _group_pool_kernel_acc,
            out_shape=jax.ShapeDtypeStruct((rows, HW), x.dtype),
            grid_spec=pl.GridSpec(
                grid=grid,
                in_specs=[pl.BlockSpec(
                    (tm, tl), lambda i, j, k: (i, k * lane_blocks + j))],
                out_specs=pl.BlockSpec((tm, tl), lambda i, j, k: (i, j)),
            ),
            compiler_params=pltpu.CompilerParams(
                dimension_semantics=("parallel", "parallel", "arbitrary"),
                vmem_limit_bytes=32 * 1024 * 1024,
            ),
            cost_estimate=cost,
        )(xv)
    else:
        # f32 with rsNum % 8 == 0 (fully dense), or HW not 128-aligned
        # (accept sublane padding rather than unaligned 2-D lane blocks).
        xv = x.reshape(rows, rs_num, HW)
        tm, tl = _choose_tiles(rows, HW, itemsize, rs_num, sublane_pack)
        grid = (pl.cdiv(rows, tm), pl.cdiv(HW, tl))
        out = pl.pallas_call(
            _group_pool_kernel_3d,
            out_shape=jax.ShapeDtypeStruct((rows, HW), x.dtype),
            grid_spec=pl.GridSpec(
                grid=grid,
                # NOTE: with ~2 MiB tiles and a long grid, pipeline_mode=
                # pl.Buffered(3) on this input spec can hide residual DMA
                # jitter (a few %); left at the default double buffer here.
                in_specs=[pl.BlockSpec((tm, rs_num, tl), lambda i, j: (i, 0, j))],
                out_specs=pl.BlockSpec((tm, tl), lambda i, j: (i, j)),
            ),
            compiler_params=pltpu.CompilerParams(
                dimension_semantics=("parallel", "parallel"),
                vmem_limit_bytes=32 * 1024 * 1024,
            ),
            cost_estimate=cost,
        )(xv)

    # TODO(synk): biggest remaining win is fusing this max into the producing
    # conv's output epilogue so the full C*rsNum tensor never round-trips HBM
    # (also the only real fix for lane-sparse HW < 128 late-stage layers).
    return out.reshape(B, C, H, W)


if __name__ == "__main__":
    key = jax.random.PRNGKey(0)
    k1, k2, k3, k4 = jax.random.split(key, 4)

    # GroupPooling(rotNum=4, scaleList=[1.0, 0.8]) -> rsNum = 8
    rot_num = 4
    scale_list = [1.0, 0.8]
    rs_num = rot_num * len(scale_list)

    # Case 1: f32, rsNum % 8 == 0, HW = 256 (128-aligned)  -> dense 3-D path.
    B, C, H, W = 2, 4, 16, 16
    x = jax.random.normal(k1, (B, C * rs_num, H, W), dtype=jnp.float32)
    y = jax.block_until_ready(group_pooling(x, rot_num, scale_list))
    y_ref = jnp.max(x.reshape(B, C, rs_num, H, W), axis=2)
    assert y.shape == (B, C, H, W)
    assert jnp.allclose(y, y_ref), "mismatch vs reference (case 1)"

    # Case 2: f32, HW = 196 (not 128-aligned) -> full-extent lane block path.
    B2, C2, H2, W2 = 2, 6, 14, 14
    x2 = jax.random.normal(k2, (B2, C2 * rs_num, H2, W2), dtype=jnp.float32)
    y2 = jax.block_until_ready(group_pooling(x2, rot_num, scale_list))
    y2_ref = jnp.max(x2.reshape(B2, C2, rs_num, H2, W2), axis=2)
    assert y2.shape == (B2, C2, H2, W2)
    assert jnp.allclose(y2, y2_ref), "mismatch vs reference (case 2)"

    # Case 3: bf16 (sublane packing 16, rsNum=8 not a multiple) -> accumulator path.
    x3 = jax.random.normal(k3, (B, C * rs_num, H, W), dtype=jnp.float32
                           ).astype(jnp.bfloat16)
    y3 = jax.block_until_ready(group_pooling(x3, rot_num, scale_list))
    y3_ref = jnp.max(x3.reshape(B, C, rs_num, H, W), axis=2)
    assert y3.dtype == jnp.bfloat16
    assert jnp.allclose(y3.astype(jnp.float32), y3_ref.astype(jnp.float32)), \
        "mismatch vs reference (case 3)"

    # Case 4: rotNum=4, scaleList=[1.0] -> rsNum=4 (f32, not multiple of 8)
    #         -> accumulator path.
    x4 = jax.random.normal(k4, (B, C * 4, H, W), dtype=jnp.float32)
    y4 = jax.block_until_ready(group_pooling(x4, 4, [1.0]))
    y4_ref = jnp.max(x4.reshape(B, C, 4, H, W), axis=2)
    assert jnp.allclose(y4, y4_ref), "mismatch vs reference (case 4)"

    print("KERNEL_OK")
</pallas_src>

<mosaic_0001>
module attributes {stable_mosaic.version = 11 : i64} {
  func.func @_group_pool_kernel_3d(%arg0: i32, %arg1: i32, %arg2: memref<8x8x256xf32, #tpu.memory_space<vmem>>, %arg3: memref<8x256xf32, #tpu.memory_space<vmem>>) attributes {dimension_semantics = [#tpu.dimension_semantics<parallel>, #tpu.dimension_semantics<parallel>], iteration_bounds = array<i64: 1, 1>, scalar_prefetch = 0 : i64, scratch_operands = 0 : i64, tpu.core_type = #tpu.core_type<tc>, window_params = [{transform_indices = @transform_0, window_bounds = array<i64: 8, 8, 256>}, {transform_indices = @transform_1, window_bounds = array<i64: 8, 256>}]} {
    %c0 = arith.constant 0 : index
    %c0_0 = arith.constant 0 : index
    %c0_1 = arith.constant 0 : index
    %0 = vector.load %arg2[%c0, %c0_0, %c0_1] : memref<8x8x256xf32, #tpu.memory_space<vmem>>, vector<8x8x256xf32>
    %cst = arith.constant dense<0xFF800000> : vector<8x256xf32>
    %1 = vector.multi_reduction <maximumf>, %0, %cst [1] : vector<8x8x256xf32> to vector<8x256xf32>
    %c0_2 = arith.constant 0 : index
    %c0_3 = arith.constant 0 : index
    %2 = vector.load %arg3[%c0_2, %c0_3] : memref<8x256xf32, #tpu.memory_space<vmem>>, vector<8x256xf32>
    tpu.vector_store %arg3[%c0_2, %c0_3], %1 {strides = array<i32>} : memref<8x256xf32, #tpu.memory_space<vmem>>, vector<8x256xf32>,
    return
  }
  func.func @transform_0(%arg0: i32, %arg1: i32) -> (i32, i32, i32) {
    %c0_i32 = arith.constant 0 : i32
    %c0_i32_0 = arith.constant 0 : i32
    return %arg0, %c0_i32, %arg1 : i32, i32, i32
  }
  func.func @transform_1(%arg0: i32, %arg1: i32) -> (i32, i32) {
    %c0_i32 = arith.constant 0 : i32
    return %arg0, %arg1 : i32, i32
  }
}

</mosaic_0001>

<llo_original>
// kernel: tpu_custom_call.1
$region0: #{tpu_custom_call.1}
  #allocation0 [shape = 'u32[]', space=smem, size = 0x4, offset = 0x4, fixed_abs, tag = 'smem constant byte address 0x4 - core index']
  #allocation1 [shape = 'u32[72,128]{1,0:T(1,128)}', space=vmem, size = 0x9000, scoped, tag = 'internal scratch']
  %s0 = inlined_call_operand.hbm [shape: f32[8,8,256], index: 0, kind: input, shape index: {}]
  %s1 = inlined_call_operand.hbm [shape: f32[8,256], index: 1, kind: output, shape index: {}]
  %s2 = sld [smem:[#allocation0]]
  $region18: #{tpu_custom_call.1} parent=0
    _
  %s4 = ssub.s32 1, %s2
  %s5 = scalar_select 0, %s4, %s2
  $region1: #{tpu_custom_call.1} parent=0
    #allocation2 [shape = 'u8[65536]{0}', space=vmem, size = 0x10000, scoped, tag = 'input window, operand 0, single buffered']
    #allocation3 [shape = 's32[1]{0}', space=sflag, size = 0x4, scoped, tag = 'scoped memory for tpu_custom_call.1']
    #allocation4 [shape = 's32[1]{0}', space=sflag, size = 0x4, scoped, tag = 'scoped memory for tpu_custom_call.1']
    #allocation5 [shape = 'u8[8192]{0}', space=vmem, size = 0x2000, scoped, tag = 'output window, operand 0, single buffered']
    %6 = vsyncpa [#allocation3], 0
    %7 = vsyncpa [#allocation4], 0
    // Predicated region
    $region2: #{tpu_custom_call.1} parent=1 // pred_check
      _
    $region3: #{tpu_custom_call.1} parent=1 // pred_check_branch
      %9 = sbr.rel (0) target = $region5
    $region4: #{tpu_custom_call.1} parent=1 // pred_region
      %11 = vsyncadd [#allocation3], 0
      %s12 = sshll.u32 %s0, 4
      %s13 = int_to_ptr.hbm [resolvable:$true] %s12
      %s14 = sshll.u32 [#allocation2], 4
      %s15 = int_to_ptr.vmem [resolvable:$true] %s14
      %20 = dma.hbm_to_vmem [thread:$0]  %s13, 2048, %s15, [#allocation3], 256, 256, 16
    $region5: #{tpu_custom_call.1} parent=1 // pred_fallthru
      _
    // Predicated region
    $region6: #{tpu_custom_call.1} parent=1 // pred_check
      _
    $region7: #{tpu_custom_call.1} parent=1 // pred_check_branch
      %22 = sbr.rel (0) target = $region9
    $region8: #{tpu_custom_call.1} parent=1 // pred_region
      %24 = dma.done [#allocation3], 2048
    $region9: #{tpu_custom_call.1} parent=1 // pred_fallthru
      _
    %v25 = vld [vmem:[#allocation2] sm:$0xff]
    %v26 = vld [vmem:[#allocation2 + $0x8] sm:$0xff]
    %v27 = vld [vmem:[#allocation2 + $0x10] sm:$0xff]
    %v28 = vld [vmem:[#allocation2 + $0x18] sm:$0xff]
    %v29 = vld [vmem:[#allocation2 + $0x20] sm:$0xff]
    %v30 = vld [vmem:[#allocation2 + $0x28] sm:$0xff]
    %v31 = vld [vmem:[#allocation2 + $0x30] sm:$0xff]
    %v32 = vld [vmem:[#allocation2 + $0x38] sm:$0xff]
    %v33 = vld [vmem:[#allocation2 + $0x40] sm:$0xff]
    %v34 = vld [vmem:[#allocation2 + $0x48] sm:$0xff]
    %v35 = vld [vmem:[#allocation2 + $0x50] sm:$0xff]
    %v36 = vld [vmem:[#allocation2 + $0x58] sm:$0xff]
    %v37 = vld [vmem:[#allocation2 + $0x60] sm:$0xff]
    %v38 = vld [vmem:[#allocation2 + $0x68] sm:$0xff]
    %v39 = vld [vmem:[#allocation2 + $0x70] sm:$0xff]
    %v40 = vld [vmem:[#allocation2 + $0x78] sm:$0xff]
    %v41 = vrot.slane %v25, 4
    %v42 = vmax.f32 %v25, %v41
    %v43 = vrot.slane %v42, 2
    %v44 = vmax.f32 %v42, %v43
    %v45 = vrot.slane %v44, 1
    %v46 = vmax.f32 %v44, %v45
    %v47 = vrot.slane %v26, 4
    %v48 = vmax.f32 %v26, %v47
    %v49 = vrot.slane %v48, 2
    %v50 = vmax.f32 %v48, %v49
    %v51 = vrot.slane %v50, 1
    %v52 = vmax.f32 %v50, %v51
    %v53 = vrot.slane %v27, 4
    %v54 = vmax.f32 %v27, %v53
    %v55 = vrot.slane %v54, 2
    %v56 = vmax.f32 %v54, %v55
    %v57 = vrot.slane %v56, 1
    %v58 = vmax.f32 %v56, %v57
    %v59 = vrot.slane %v28, 4
    %v60 = vmax.f32 %v28, %v59
    %v61 = vrot.slane %v60, 2
    %v62 = vmax.f32 %v60, %v61
    %v63 = vrot.slane %v62, 1
    %v64 = vmax.f32 %v62, %v63
    %v65 = vrot.slane %v29, 4
    %v66 = vmax.f32 %v29, %v65
    %v67 = vrot.slane %v66, 2
    %v68 = vmax.f32 %v66, %v67
    %v69 = vrot.slane %v68, 1
    %v70 = vmax.f32 %v68, %v69
    %v71 = vrot.slane %v30, 4
    %v72 = vmax.f32 %v30, %v71
    %v73 = vrot.slane %v72, 2
    %v74 = vmax.f32 %v72, %v73
    %v75 = vrot.slane %v74, 1
    %v76 = vmax.f32 %v74, %v75
    %v77 = vrot.slane %v31, 4
    %v78 = vmax.f32 %v31, %v77
    %v79 = vrot.slane %v78, 2
    %v80 = vmax.f32 %v78, %v79
    %v81 = vrot.slane %v80, 1
    %v82 = vmax.f32 %v80, %v81
    %v83 = vrot.slane %v32, 4
    %v84 = vmax.f32 %v32, %v83
    %v85 = vrot.slane %v84, 2
    %v86 = vmax.f32 %v84, %v85
    %v87 = vrot.slane %v86, 1
    %v88 = vmax.f32 %v86, %v87
    %v89 = vrot.slane %v33, 4
    %v90 = vmax.f32 %v33, %v89
    %v91 = vrot.slane %v90, 2
    %v92 = vmax.f32 %v90, %v91
    %v93 = vrot.slane %v92, 1
    %v94 = vmax.f32 %v92, %v93
    %v95 = vrot.slane %v34, 4
    %v96 = vmax.f32 %v34, %v95
    %v97 = vrot.slane %v96, 2
    %v98 = vmax.f32 %v96, %v97
    %v99 = vrot.slane %v98, 1
    %v100 = vmax.f32 %v98, %v99
    %v101 = vrot.slane %v35, 4
    %v102 = vmax.f32 %v35, %v101
    %v103 = vrot.slane %v102, 2
    %v104 = vmax.f32 %v102, %v103
    %v105 = vrot.slane %v104, 1
    %v106 = vmax.f32 %v104, %v105
    %v107 = vrot.slane %v36, 4
    %v108 = vmax.f32 %v36, %v107
    %v109 = vrot.slane %v108, 2
    %v110 = vmax.f32 %v108, %v109
    %v111 = vrot.slane %v110, 1
    %v112 = vmax.f32 %v110, %v111
    %v113 = vrot.slane %v37, 4
    %v114 = vmax.f32 %v37, %v113
    %v115 = vrot.slane %v114, 2
    %v116 = vmax.f32 %v114, %v115
    %v117 = vrot.slane %v116, 1
    %v118 = vmax.f32 %v116, %v117
    %v119 = vrot.slane %v38, 4
    %v120 = vmax.f32 %v38, %v119
    %v121 = vrot.slane %v120, 2
    %v122 = vmax.f32 %v120, %v121
    %v123 = vrot.slane %v122, 1
    %v124 = vmax.f32 %v122, %v123
    %v125 = vrot.slane %v39, 4
    %v126 = vmax.f32 %v39, %v125
    %v127 = vrot.slane %v126, 2
    %v128 = vmax.f32 %v126, %v127
    %v129 = vrot.slane %v128, 1
    %v130 = vmax.f32 %v128, %v129
    %v131 = vrot.slane %v40, 4
    %v132 = vmax.f32 %v40, %v131
    %v133 = vrot.slane %v132, 2
    %v134 = vmax.f32 %v132, %v133
    %v135 = vrot.slane %v134, 1
    %v136 = vmax.f32 %v134, %v135
    %vm153 = vcmask 1041409
    %v154 = vsel %vm153, %v58, %v46
    %vm155 = vcmask 1042434
    %v156 = vsel %vm155, %v70, %v154
    %vm157 = vcmask 1043459
    %v158 = vsel %vm157, %v82, %v156
    %vm159 = vcmask 1044484
    %v160 = vsel %vm159, %v94, %v158
    %vm161 = vcmask 1045509
    %v162 = vsel %vm161, %v106, %v160
    %vm163 = vcmask 1046534
    %v164 = vsel %vm163, %v118, %v162
    %vm165 = vcmask 1047559
    %v166 = vsel %vm165, %v130, %v164
    %v167 = vsel %vm153, %v64, %v52
    %v168 = vsel %vm155, %v76, %v167
    %v169 = vsel %vm157, %v88, %v168
    %v170 = vsel %vm159, %v100, %v169
    %v171 = vsel %vm161, %v112, %v170
    %v172 = vsel %vm163, %v124, %v171
    %v173 = vsel %vm165, %v136, %v172
    %176 = vst [vmem:[#allocation5] sm:$0xff] %v166
    %177 = vst [vmem:[#allocation5 + $0x8] sm:$0xff] %v173
    // Predicated region
    $region10: #{tpu_custom_call.1} parent=1 // pred_check
      _
    $region11: #{tpu_custom_call.1} parent=1 // pred_check_branch
      %179 = sbr.rel (0) target = $region13
    $region12: #{tpu_custom_call.1} parent=1 // pred_region
      %181 = vsyncadd [#allocation4], 0
      %s183 = sshll.u32 [#allocation5], 4
      %s184 = int_to_ptr.vmem [resolvable:$true] %s183
      %s185 = sshll.u32 %s1, 4
      %s186 = int_to_ptr.hbm [resolvable:$true] %s185
      %188 = dma.vmem_to_hbm [thread:$0]  %s184, 256, %s186, [#allocation4]
    $region13: #{tpu_custom_call.1} parent=1 // pred_fallthru
      _
    // Predicated region
    $region14: #{tpu_custom_call.1} parent=1 // pred_check
      _
    $region15: #{tpu_custom_call.1} parent=1 // pred_check_branch
      %190 = sbr.rel (0) target = $region17
    $region16: #{tpu_custom_call.1} parent=1 // pred_region
      %192 = dma.done [#allocation4], 256
    $region17: #{tpu_custom_call.1} parent=1 // pred_fallthru
      _
    %193 = vsyncpa [#allocation3], 1
    %194 = vsyncpa [#allocation4], 1

</llo_original>
